<compile_context>
chip_gen: v5e
topology: v5e:2x2
jax: 0.10.0
libtpu: 0.0.40
codegen_flags: <defaults>
</compile_context>

<pallas_src>
import jax
import jax.numpy as jnp
from jax.experimental import pallas as pl
from jax.experimental.pallas import tpu as pltpu

LANE = 128
ROW_ALIGN = 16      # multiple of the bf16 sublane packing (16,128) -> safe output tiling
MAX_TM = 2048       # per-tile row cap: keeps per-step VMEM footprint ~5 MiB


def _round_up(x, m):
    return ((x + m - 1) // m) * m


def _num_tensorcores():
    """Best-effort TensorCore count per chip (megacore / v7x have 2)."""
    try:
        kind = (jax.devices()[0].device_kind or "").lower()
    except Exception:
        return 1
    if "v4" in kind or "v5p" in kind or "v7" in kind:
        return 2
    return 1


def dqn_kernel(x_ref, w1_ref, b1_ref, w2_ref, b2_ref, w3_ref, b3_ref, o_ref):
    x = x_ref[...]                              # (TM, K) f32
    k_dim = x.shape[1]

    # ---- Layer 1.
    if k_dim <= 8:
        # Degenerate K (state_dim = 1): VPU broadcast multiply-add (outer product),
        # avoids pushing a K=1 matmul (127/255 wasted K lanes) through the MXU.
        w1 = w1_ref[...]                        # (K, H) f32
        h1 = b1_ref[...]                        # (1, H) f32, broadcasts over rows
        for k in range(k_dim):                  # tiny static trip count
            h1 = h1 + x[:, k:k + 1] * w1[k:k + 1, :]
    else:
        # If state_dim ever grows, the MXU (idle here) becomes the cheaper path.
        h1 = jnp.dot(x.astype(jnp.bfloat16), w1_ref[...].astype(jnp.bfloat16),
                     preferred_element_type=jnp.float32) + b1_ref[...]
    h1 = jnp.maximum(h1, 0.0)

    # ---- Layer 2: bf16 operands, f32 accumulation on MXU, f32 epilogue on VPU.
    h2 = jnp.dot(h1.astype(jnp.bfloat16), w2_ref[...],
                 preferred_element_type=jnp.float32) + b2_ref[...]
    h2 = jnp.maximum(h2, 0.0)

    # ---- Layer 3: lane-dense (padded-to-128) output, stored as bf16 (half writeback).
    o = jnp.dot(h2.astype(jnp.bfloat16), w3_ref[...],
                preferred_element_type=jnp.float32) + b3_ref[...]
    o_ref[...] = o.astype(o_ref.dtype)


def prepare_params(params):
    """One-time prep (hoisted out of the forward hot path per perf review):
    zero-pad the last layer to a lane multiple and pre-cast MXU weights to bf16.
    Call once after init / after every weight update, not per forward call."""
    w1, b1 = params["w1"], params["b1"]
    w2, b2 = params["w2"], params["b2"]
    w3, b3 = params["w3"], params["b3"]
    hidden = w1.shape[1]
    action_dim = w3.shape[1]
    n_pad = _round_up(action_dim, LANE)
    w3p = jnp.zeros((hidden, n_pad), jnp.float32).at[:, :action_dim].set(w3)
    b3p = jnp.zeros((1, n_pad), jnp.float32).at[:, :action_dim].set(b3)
    return dict(
        w1=jnp.asarray(w1, jnp.float32), b1=jnp.asarray(b1, jnp.float32),
        w2=w2.astype(jnp.bfloat16), b2=jnp.asarray(b2, jnp.float32),
        w3=w3p.astype(jnp.bfloat16), b3=b3p,
        hidden=hidden, action_dim=action_dim, n_pad=n_pad,
    )


def dqn_forward(x, kp, *, num_tiles=None):
    """x: (B, state_dim) float32. kp: output of prepare_params()."""
    B, state_dim = x.shape
    hidden = kp["hidden"]
    action_dim = kp["action_dim"]
    n_pad = kp["n_pad"]

    # --- Batch tiling: one tile per TensorCore; never split tiny batches. ---
    if num_tiles is None:
        num_tiles = _num_tensorcores()
    if B < 128:
        num_tiles = 1
    # Keep per-tile rows bounded so per-step VMEM stays small on every generation.
    num_tiles = max(num_tiles, -(-B // MAX_TM))

    b_pad = _round_up(B, ROW_ALIGN * num_tiles)
    if b_pad != B:
        x = jnp.pad(x, ((0, b_pad - B), (0, 0)))
    tm = b_pad // num_tiles
    grid = (num_tiles,)

    out = pl.pallas_call(
        dqn_kernel,
        out_shape=jax.ShapeDtypeStruct((b_pad, n_pad), jnp.bfloat16),
        grid_spec=pltpu.PrefetchScalarGridSpec(
            num_scalar_prefetch=0,
            grid=grid,
            in_specs=[
                # Activations: tiled over the batch grid axis.
                pl.BlockSpec((tm, state_dim), lambda i: (i, 0)),
                # Weights/biases: constant index_map -> fetched once, VMEM-resident.
                pl.BlockSpec((state_dim, hidden), lambda i: (0, 0)),
                pl.BlockSpec((1, hidden), lambda i: (0, 0)),
                pl.BlockSpec((hidden, hidden), lambda i: (0, 0)),
                pl.BlockSpec((1, hidden), lambda i: (0, 0)),
                pl.BlockSpec((hidden, n_pad), lambda i: (0, 0)),
                pl.BlockSpec((1, n_pad), lambda i: (0, 0)),
            ],
            out_specs=pl.BlockSpec((tm, n_pad), lambda i: (i, 0)),
        ),
        compiler_params=pltpu.CompilerParams(
            dimension_semantics=("parallel",)),  # multi-TC chips split the batch tiles
    )(x, kp["w1"], kp["b1"], kp["w2"], kp["b2"], kp["w3"], kp["b3"])

    return out[:B, :action_dim].astype(jnp.float32)


def init_params(key, state_dim, action_dim, hidden_dim=128):
    """Deterministic PyTorch-style (uniform +/- 1/sqrt(fan_in)) init, f32."""
    ks = jax.random.split(key, 6)

    def linear(kw, kb, fan_in, fan_out):
        bound = 1.0 / jnp.sqrt(fan_in)
        w = jax.random.uniform(kw, (fan_in, fan_out), jnp.float32, -bound, bound)
        b = jax.random.uniform(kb, (1, fan_out), jnp.float32, -bound, bound)
        return w, b

    w1, b1 = linear(ks[0], ks[1], state_dim, hidden_dim)
    w2, b2 = linear(ks[2], ks[3], hidden_dim, hidden_dim)
    w3, b3 = linear(ks[4], ks[5], hidden_dim, action_dim)
    return dict(w1=w1, b1=b1, w2=w2, b2=b2, w3=w3, b3=b3)


def ref_f32(x, p):
    h1 = jnp.maximum(x @ p["w1"] + p["b1"], 0.0)
    h2 = jnp.maximum(h1 @ p["w2"] + p["b2"], 0.0)
    return h2 @ p["w3"] + p["b3"]


def ref_kernel_numerics(x, p):
    # Mirrors the kernel: bf16 matmul operands, f32 accumulation + epilogue, bf16 store.
    h1 = jnp.maximum(x @ p["w1"] + p["b1"], 0.0)
    h2 = jnp.maximum(
        jnp.dot(h1.astype(jnp.bfloat16), p["w2"].astype(jnp.bfloat16),
                preferred_element_type=jnp.float32) + p["b2"], 0.0)
    o = jnp.dot(h2.astype(jnp.bfloat16), p["w3"].astype(jnp.bfloat16),
                preferred_element_type=jnp.float32) + p["b3"]
    return o.astype(jnp.bfloat16).astype(jnp.float32)


if __name__ == "__main__":
    # state_dim = 1 per the reference module; action_dim = max out-degree of the
    # road graph -- pick a small synthetic value.
    state_dim = 1
    action_dim = 6
    hidden_dim = 128

    key = jax.random.PRNGKey(0)
    kx, kx2, kp_key = jax.random.split(key, 3)
    params = init_params(kp_key, state_dim, action_dim, hidden_dim)
    kparams = prepare_params(params)          # hoisted, one-time weight prep

    forward = jax.jit(lambda xx: dqn_forward(xx, kparams))

    # --- Tiny batch (grid collapses to a single step). ---
    x_small = jax.random.normal(kx, (8, state_dim), jnp.float32)
    out_small = jax.block_until_ready(forward(x_small))
    assert out_small.shape == (8, action_dim)
    assert jnp.allclose(out_small, ref_kernel_numerics(x_small, params),
                        atol=1e-2, rtol=1e-2)
    assert jnp.allclose(out_small, ref_f32(x_small, params), atol=7.5e-2, rtol=7.5e-2)

    # --- Larger batch: 1 tile on v5e/v6e, 2 even tiles on multi-TC chips. ---
    x_big = jax.random.normal(kx2, (1024, state_dim), jnp.float32)
    out_big = jax.block_until_ready(forward(x_big))
    assert out_big.shape == (1024, action_dim)
    assert jnp.allclose(out_big, ref_kernel_numerics(x_big, params),
                        atol=1e-2, rtol=1e-2)
    assert jnp.allclose(out_big, ref_f32(x_big, params), atol=7.5e-2, rtol=7.5e-2)

    # --- Awkward batch size: padding is now only to a multiple of 16*num_tiles. ---
    x_odd = jax.random.normal(kx, (37, state_dim), jnp.float32)
    out_odd = jax.block_until_ready(forward(x_odd))
    assert out_odd.shape == (37, action_dim)
    assert jnp.allclose(out_odd, ref_kernel_numerics(x_odd, params),
                        atol=1e-2, rtol=1e-2)

    print("KERNEL_OK")
</pallas_src>

<mosaic_0001>
module attributes {stable_mosaic.version = 11 : i64} {
  func.func @dqn_kernel(%arg0: i32, %arg1: memref<16x1xf32, #tpu.memory_space<vmem>>, %arg2: memref<1x128xf32, #tpu.memory_space<vmem>>, %arg3: memref<1x128xf32, #tpu.memory_space<vmem>>, %arg4: memref<128x128xbf16, #tpu.memory_space<vmem>>, %arg5: memref<1x128xf32, #tpu.memory_space<vmem>>, %arg6: memref<128x128xbf16, #tpu.memory_space<vmem>>, %arg7: memref<1x128xf32, #tpu.memory_space<vmem>>, %arg8: memref<16x128xbf16, #tpu.memory_space<vmem>>) attributes {dimension_semantics = [#tpu.dimension_semantics<parallel>], iteration_bounds = array<i64: 1>, scalar_prefetch = 0 : i64, scratch_operands = 0 : i64, tpu.core_type = #tpu.core_type<tc>, window_params = [{transform_indices = @transform_0, window_bounds = array<i64: 16, 1>}, {pipeline_mode = #tpu.pipeline_mode<synchronous>, transform_indices = @transform_1, window_bounds = array<i64: 1, 128>}, {pipeline_mode = #tpu.pipeline_mode<synchronous>, transform_indices = @transform_2, window_bounds = array<i64: 1, 128>}, {pipeline_mode = #tpu.pipeline_mode<synchronous>, transform_indices = @transform_3, window_bounds = array<i64: 128, 128>}, {pipeline_mode = #tpu.pipeline_mode<synchronous>, transform_indices = @transform_4, window_bounds = array<i64: 1, 128>}, {pipeline_mode = #tpu.pipeline_mode<synchronous>, transform_indices = @transform_5, window_bounds = array<i64: 128, 128>}, {pipeline_mode = #tpu.pipeline_mode<synchronous>, transform_indices = @transform_6, window_bounds = array<i64: 1, 128>}, {transform_indices = @transform_7, window_bounds = array<i64: 16, 128>}]} {
    %c0 = arith.constant 0 : index
    %c0_0 = arith.constant 0 : index
    %0 = vector.load %arg1[%c0, %c0_0] : memref<16x1xf32, #tpu.memory_space<vmem>>, vector<16x1xf32>
    %c0_1 = arith.constant 0 : index
    %c0_2 = arith.constant 0 : index
    %1 = vector.load %arg2[%c0_1, %c0_2] : memref<1x128xf32, #tpu.memory_space<vmem>>, vector<1x128xf32>
    %c0_3 = arith.constant 0 : index
    %c0_4 = arith.constant 0 : index
    %2 = vector.load %arg3[%c0_3, %c0_4] : memref<1x128xf32, #tpu.memory_space<vmem>>, vector<1x128xf32>
    %3 = vector.broadcast %0 : vector<16x1xf32> to vector<16x128xf32>
    %4 = vector.broadcast %1 : vector<1x128xf32> to vector<16x128xf32>
    %5 = arith.mulf %3, %4 : vector<16x128xf32>
    %6 = vector.broadcast %2 : vector<1x128xf32> to vector<16x128xf32>
    %7 = arith.addf %6, %5 : vector<16x128xf32>
    %cst = arith.constant 0.000000e+00 : f32
    %8 = vector.broadcast %cst : f32 to vector<16x128xf32>
    %9 = arith.maximumf %7, %8 : vector<16x128xf32>
    %10 = arith.truncf %9 : vector<16x128xf32> to vector<16x128xbf16>
    %c0_5 = arith.constant 0 : index
    %c0_6 = arith.constant 0 : index
    %11 = vector.load %arg4[%c0_5, %c0_6] : memref<128x128xbf16, #tpu.memory_space<vmem>>, vector<128x128xbf16>
    %cst_7 = arith.constant dense<0.000000e+00> : vector<16x128xf32>
    %12 = tpu.matmul %10, %11, %cst_7 {dimension_numbers = #tpu.dot_dimension_numbers<[1], [0], [0], [1], [0, 0, 1, 1], [], []>} : vector<16x128xbf16>, vector<128x128xbf16>, vector<16x128xf32> -> vector<16x128xf32>
    %c0_8 = arith.constant 0 : index
    %c0_9 = arith.constant 0 : index
    %13 = vector.load %arg5[%c0_8, %c0_9] : memref<1x128xf32, #tpu.memory_space<vmem>>, vector<1x128xf32>
    %14 = vector.broadcast %13 : vector<1x128xf32> to vector<16x128xf32>
    %15 = arith.addf %12, %14 : vector<16x128xf32>
    %cst_10 = arith.constant 0.000000e+00 : f32
    %16 = vector.broadcast %cst_10 : f32 to vector<16x128xf32>
    %17 = arith.maximumf %15, %16 : vector<16x128xf32>
    %18 = arith.truncf %17 : vector<16x128xf32> to vector<16x128xbf16>
    %c0_11 = arith.constant 0 : index
    %c0_12 = arith.constant 0 : index
    %19 = vector.load %arg6[%c0_11, %c0_12] : memref<128x128xbf16, #tpu.memory_space<vmem>>, vector<128x128xbf16>
    %cst_13 = arith.constant dense<0.000000e+00> : vector<16x128xf32>
    %20 = tpu.matmul %18, %19, %cst_13 {dimension_numbers = #tpu.dot_dimension_numbers<[1], [0], [0], [1], [0, 0, 1, 1], [], []>} : vector<16x128xbf16>, vector<128x128xbf16>, vector<16x128xf32> -> vector<16x128xf32>
    %c0_14 = arith.constant 0 : index
    %c0_15 = arith.constant 0 : index
    %21 = vector.load %arg7[%c0_14, %c0_15] : memref<1x128xf32, #tpu.memory_space<vmem>>, vector<1x128xf32>
    %22 = vector.broadcast %21 : vector<1x128xf32> to vector<16x128xf32>
    %23 = arith.addf %20, %22 : vector<16x128xf32>
    %24 = arith.truncf %23 : vector<16x128xf32> to vector<16x128xbf16>
    %c0_16 = arith.constant 0 : index
    %c0_17 = arith.constant 0 : index
    %25 = vector.load %arg8[%c0_16, %c0_17] : memref<16x128xbf16, #tpu.memory_space<vmem>>, vector<16x128xbf16>
    tpu.vector_store %arg8[%c0_16, %c0_17], %24 {strides = array<i32>} : memref<16x128xbf16, #tpu.memory_space<vmem>>, vector<16x128xbf16>,
    return
  }
  func.func @transform_0(%arg0: i32) -> (i32, i32) {
    %c0_i32 = arith.constant 0 : i32
    %c0_i32_0 = arith.constant 0 : i32
    return %arg0, %c0_i32 : i32, i32
  }
  func.func @transform_1(%arg0: i32) -> (i32, i32) {
    %c0_i32 = arith.constant 0 : i32
    %c0_i32_0 = arith.constant 0 : i32
    %c0_i32_1 = arith.constant 0 : i32
    return %c0_i32, %c0_i32_0 : i32, i32
  }
  func.func @transform_2(%arg0: i32) -> (i32, i32) {
    %c0_i32 = arith.constant 0 : i32
    %c0_i32_0 = arith.constant 0 : i32
    %c0_i32_1 = arith.constant 0 : i32
    return %c0_i32, %c0_i32_0 : i32, i32
  }
  func.func @transform_3(%arg0: i32) -> (i32, i32) {
    %c0_i32 = arith.constant 0 : i32
    %c0_i32_0 = arith.constant 0 : i32
    %c0_i32_1 = arith.constant 0 : i32
    return %c0_i32, %c0_i32_0 : i32, i32
  }
  func.func @transform_4(%arg0: i32) -> (i32, i32) {
    %c0_i32 = arith.constant 0 : i32
    %c0_i32_0 = arith.constant 0 : i32
    %c0_i32_1 = arith.constant 0 : i32
    return %c0_i32, %c0_i32_0 : i32, i32
  }
  func.func @transform_5(%arg0: i32) -> (i32, i32) {
    %c0_i32 = arith.constant 0 : i32
    %c0_i32_0 = arith.constant 0 : i32
    %c0_i32_1 = arith.constant 0 : i32
    return %c0_i32, %c0_i32_0 : i32, i32
  }
  func.func @transform_6(%arg0: i32) -> (i32, i32) {
    %c0_i32 = arith.constant 0 : i32
    %c0_i32_0 = arith.constant 0 : i32
    %c0_i32_1 = arith.constant 0 : i32
    return %c0_i32, %c0_i32_0 : i32, i32
  }
  func.func @transform_7(%arg0: i32) -> (i32, i32) {
    %c0_i32 = arith.constant 0 : i32
    %c0_i32_0 = arith.constant 0 : i32
    return %arg0, %c0_i32 : i32, i32
  }
}

</mosaic_0001>

<llo_original>
// kernel: _lambda_.1
$region0: #{_lambda_.1}
  #allocation0 [shape = 'u32[]', space=smem, size = 0x4, offset = 0x4, fixed_abs, tag = 'smem constant byte address 0x4 - core index']
  #allocation1 [shape = 'u32[72,128]{1,0:T(1,128)}', space=vmem, size = 0x9000, scoped, tag = 'internal scratch']
  %s0 = inlined_call_operand.vmem [shape: f32[16,1], index: 0, kind: input, shape index: {}]
  %s1 = inlined_call_operand.vmem [shape: f32[1,128], index: 1, kind: input, shape index: {}]
  %s2 = inlined_call_operand.vmem [shape: f32[1,128], index: 2, kind: input, shape index: {}]
  %s3 = inlined_call_operand.hbm [shape: bf16[128,128], index: 3, kind: input, shape index: {}]
  %s4 = inlined_call_operand.vmem [shape: f32[1,128], index: 4, kind: input, shape index: {}]
  %s5 = inlined_call_operand.hbm [shape: bf16[128,128], index: 5, kind: input, shape index: {}]
  %s6 = inlined_call_operand.vmem [shape: f32[1,128], index: 6, kind: input, shape index: {}]
  %s7 = inlined_call_operand.vmem [shape: bf16[16,128], index: 7, kind: output, shape index: {}]
  %s8 = sld [smem:[#allocation0]]
  $region46: #{_lambda_.1} parent=0
    _
  %s10 = ssub.s32 1, %s8
  %s11 = scalar_select 0, %s10, %s8
  $region1: #{_lambda_.1} parent=0
    #allocation2 [shape = 'u8[32768]{0}', space=vmem, size = 0x8000, scoped, tag = 'input window, operand 3, single buffered']
    #allocation3 [shape = 's32[1]{0}', space=sflag, size = 0x4, scoped, tag = 'scoped memory for _lambda_.1']
    #allocation4 [shape = 'u8[32768]{0}', space=vmem, size = 0x8000, scoped, tag = 'input window, operand 5, single buffered']
    #allocation5 [shape = 's32[1]{0}', space=sflag, size = 0x4, scoped, tag = 'scoped memory for _lambda_.1']
    %12 = vsyncpa [#allocation3], 0
    %13 = vsyncpa [#allocation5], 0
    // Predicated region
    $region2: #{_lambda_.1} parent=1 // pred_check
      _
    $region3: #{_lambda_.1} parent=1 // pred_check_branch
      %15 = sbr.rel (0) target = $region5
    $region4: #{_lambda_.1} parent=1 // pred_region
      _
    $region5: #{_lambda_.1} parent=1 // pred_fallthru
      _
    // Predicated region
    $region6: #{_lambda_.1} parent=1 // pred_check
      _
    $region7: #{_lambda_.1} parent=1 // pred_check_branch
      %17 = sbr.rel (0) target = $region9
    $region8: #{_lambda_.1} parent=1 // pred_region
      _
    $region9: #{_lambda_.1} parent=1 // pred_fallthru
      _
    // Predicated region
    $region10: #{_lambda_.1} parent=1 // pred_check
      _
    $region11: #{_lambda_.1} parent=1 // pred_check_branch
      %19 = sbr.rel (0) target = $region13
    $region12: #{_lambda_.1} parent=1 // pred_region
      _
    $region13: #{_lambda_.1} parent=1 // pred_fallthru
      _
    // Predicated region
    $region14: #{_lambda_.1} parent=1 // pred_check
      _
    $region15: #{_lambda_.1} parent=1 // pred_check_branch
      %21 = sbr.rel (0) target = $region17
    $region16: #{_lambda_.1} parent=1 // pred_region
      %23 = vsyncadd [#allocation3], 0
      %s24 = sshll.u32 %s3, 4
      %s25 = int_to_ptr.hbm [resolvable:$true] %s24
      %s26 = sshll.u32 [#allocation2], 4
      %s27 = int_to_ptr.vmem [resolvable:$true] %s26
      %32 = dma.hbm_to_vmem [thread:$0]  %s25, 1024, %s27, [#allocation3], 64, 64, 4
    $region17: #{_lambda_.1} parent=1 // pred_fallthru
      _
    // Predicated region
    $region18: #{_lambda_.1} parent=1 // pred_check
      _
    $region19: #{_lambda_.1} parent=1 // pred_check_branch
      %34 = sbr.rel (0) target = $region21
    $region20: #{_lambda_.1} parent=1 // pred_region
      _
    $region21: #{_lambda_.1} parent=1 // pred_fallthru
      _
    // Predicated region
    $region22: #{_lambda_.1} parent=1 // pred_check
      _
    $region23: #{_lambda_.1} parent=1 // pred_check_branch
      %36 = sbr.rel (0) target = $region25
    $region24: #{_lambda_.1} parent=1 // pred_region
      %38 = vsyncadd [#allocation5], 0
      %s39 = sshll.u32 %s5, 4
      %s40 = int_to_ptr.hbm [resolvable:$true] %s39
      %s41 = sshll.u32 [#allocation4], 4
      %s42 = int_to_ptr.vmem [resolvable:$true] %s41
      %47 = dma.hbm_to_vmem [thread:$0]  %s40, 1024, %s42, [#allocation5], 64, 64, 4
    $region25: #{_lambda_.1} parent=1 // pred_fallthru
      _
    // Predicated region
    $region26: #{_lambda_.1} parent=1 // pred_check
      _
    $region27: #{_lambda_.1} parent=1 // pred_check_branch
      %49 = sbr.rel (0) target = $region29
    $region28: #{_lambda_.1} parent=1 // pred_region
      _
    $region29: #{_lambda_.1} parent=1 // pred_fallthru
      _
    // Predicated region
    $region30: #{_lambda_.1} parent=1 // pred_check
      _
    $region31: #{_lambda_.1} parent=1 // pred_check_branch
      %51 = sbr.rel (0) target = $region33
    $region32: #{_lambda_.1} parent=1 // pred_region
      %53 = dma.done [#allocation3], 1024
    $region33: #{_lambda_.1} parent=1 // pred_fallthru
      _
    // Predicated region
    $region34: #{_lambda_.1} parent=1 // pred_check
      _
    $region35: #{_lambda_.1} parent=1 // pred_check_branch
      %55 = sbr.rel (0) target = $region37
    $region36: #{_lambda_.1} parent=1 // pred_region
      %57 = dma.done [#allocation5], 1024
    $region37: #{_lambda_.1} parent=1 // pred_fallthru
      _
    %v58 = vld [vmem:[%s0] sm:$0xff]
    %v59 = vld [vmem:[%s0 + $0x8] sm:$0xff]
    %v60 = vld [vmem:[%s1] sm:$0x1]
    %v61 = vld [vmem:[%s2] sm:$0x1]
    %63 = vset.pattern.permute.xlu0 0
    %64 = vperm.xlu0 %63, %v58
    %v65 = vpop.permute.xlu0 %64
    %68 = vset.pattern.permute.xlu0 0
    %69 = vperm.xlu0 %68, %v59
    %v70 = vpop.permute.xlu0 %69
    %v73 = vperm.slane %v60, 0
    %v75 = vmul.f32 %v65, %v73
    %v76 = vmul.f32 %v70, %v73
    %v78 = vperm.slane %v61, 0
    %v80 = vadd.f32 %v78, %v75
    %v81 = vadd.f32 %v78, %v76
    %v82 = vmax.f32 %v80, 0.0
    %v83 = vmax.f32 %v81, 0.0
    %v84 = vpack.c.bf16 %v83, %v82
    %v85 = vld [vmem:[#allocation2] sm:$0xf]
    %v86 = vld [vmem:[#allocation2 + $0x4] sm:$0xf]
    %v87 = vld [vmem:[#allocation2 + $0x8] sm:$0xf]
    %v88 = vld [vmem:[#allocation2 + $0xc] sm:$0xf]
    %v89 = vld [vmem:[#allocation2 + $0x10] sm:$0xf]
    %v90 = vld [vmem:[#allocation2 + $0x14] sm:$0xf]
    %v91 = vld [vmem:[#allocation2 + $0x18] sm:$0xf]
    %v92 = vld [vmem:[#allocation2 + $0x1c] sm:$0xf]
    %v93 = vld [vmem:[#allocation2 + $0x20] sm:$0xf]
    %v94 = vld [vmem:[#allocation2 + $0x24] sm:$0xf]
    %v95 = vld [vmem:[#allocation2 + $0x28] sm:$0xf]
    %v96 = vld [vmem:[#allocation2 + $0x2c] sm:$0xf]
    %v97 = vld [vmem:[#allocation2 + $0x30] sm:$0xf]
    %v98 = vld [vmem:[#allocation2 + $0x34] sm:$0xf]
    %v99 = vld [vmem:[#allocation2 + $0x38] sm:$0xf]
    %v100 = vld [vmem:[#allocation2 + $0x3c] sm:$0xf]
    %v101 = vld [vmem:[%s4] sm:$0x1]
    %v103 = vperm.slane %v101, 0
    %v121 = vunpack.c.l.b16 %v85
    %v122 = vunpack.c.l.b16 %v86
    %v123 = vunpack.c.l.b16 %v87
    %v124 = vunpack.c.l.b16 %v88
    %v125 = vunpack.c.l.b16 %v89
    %v126 = vunpack.c.l.b16 %v90
    %v127 = vunpack.c.l.b16 %v91
    %v128 = vunpack.c.l.b16 %v92
    %v129 = vunpack.c.l.b16 %v93
    %v130 = vunpack.c.l.b16 %v94
    %v131 = vunpack.c.l.b16 %v95
    %v132 = vunpack.c.l.b16 %v96
    %v133 = vunpack.c.l.b16 %v97
    %v134 = vunpack.c.l.b16 %v98
    %v135 = vunpack.c.l.b16 %v99
    %v136 = vunpack.c.l.b16 %v100
    %v137 = vpack.c.b16 %v122, %v121
    %v138 = vpack.c.b16 %v124, %v123
    %v139 = vpack.c.b16 %v126, %v125
    %v140 = vpack.c.b16 %v128, %v127
    %v141 = vpack.c.b16 %v130, %v129
    %v142 = vpack.c.b16 %v132, %v131
    %v143 = vpack.c.b16 %v134, %v133
    %v144 = vpack.c.b16 %v136, %v135
    %153 = vmatpush.bf16.msra.mxu0 %v144
    %154 = vmatpush.bf16.msra.mxu0 %v143
    %155 = vmatpush.bf16.msra.mxu0 %v142
    %156 = vmatpush.bf16.msra.mxu0 %v141
    %157 = vmatpush.bf16.msra.mxu0 %v140
    %158 = vmatpush.bf16.msra.mxu0 %v139
    %159 = vmatpush.bf16.msra.mxu0 %v138
    %160 = vmatpush.bf16.msra.mxu0 %v137
    %161 = vmatmul.bf16.gmra.mxu0 %v84
    %v162 = vpop.f32.mrf.mxu0
    %v163 = vadd.f32 %v103, %v162
    %v164 = vpop.f32.mrf.mxu0
    %v165 = vadd.f32 %v103, %v164
    %166 = vdwg.mxu0
    %v167 = vmax.f32 %v163, 0.0
    %v168 = vmax.f32 %v165, 0.0
    %v169 = vpack.c.bf16 %v168, %v167
    %v170 = vld [vmem:[#allocation4] sm:$0xf]
    %v171 = vld [vmem:[#allocation4 + $0x4] sm:$0xf]
    %v172 = vld [vmem:[#allocation4 + $0x8] sm:$0xf]
    %v173 = vld [vmem:[#allocation4 + $0xc] sm:$0xf]
    %v174 = vld [vmem:[#allocation4 + $0x10] sm:$0xf]
    %v175 = vld [vmem:[#allocation4 + $0x14] sm:$0xf]
    %v176 = vld [vmem:[#allocation4 + $0x18] sm:$0xf]
    %v177 = vld [vmem:[#allocation4 + $0x1c] sm:$0xf]
    %v178 = vld [vmem:[#allocation4 + $0x20] sm:$0xf]
    %v179 = vld [vmem:[#allocation4 + $0x24] sm:$0xf]
    %v180 = vld [vmem:[#allocation4 + $0x28] sm:$0xf]
    %v181 = vld [vmem:[#allocation4 + $0x2c] sm:$0xf]
    %v182 = vld [vmem:[#allocation4 + $0x30] sm:$0xf]
    %v183 = vld [vmem:[#allocation4 + $0x34] sm:$0xf]
    %v184 = vld [vmem:[#allocation4 + $0x38] sm:$0xf]
    %v185 = vld [vmem:[#allocation4 + $0x3c] sm:$0xf]
    %v186 = vld [vmem:[%s6] sm:$0x1]
    %v188 = vperm.slane %v186, 0
    %v206 = vunpack.c.l.b16 %v170
    %v207 = vunpack.c.l.b16 %v171
    %v208 = vunpack.c.l.b16 %v172
    %v209 = vunpack.c.l.b16 %v173
    %v210 = vunpack.c.l.b16 %v174
    %v211 = vunpack.c.l.b16 %v175
    %v212 = vunpack.c.l.b16 %v176
    %v213 = vunpack.c.l.b16 %v177
    %v214 = vunpack.c.l.b16 %v178
    %v215 = vunpack.c.l.b16 %v179
    %v216 = vunpack.c.l.b16 %v180
    %v217 = vunpack.c.l.b16 %v181
    %v218 = vunpack.c.l.b16 %v182
    %v219 = vunpack.c.l.b16 %v183
    %v220 = vunpack.c.l.b16 %v184
    %v221 = vunpack.c.l.b16 %v185
    %v222 = vpack.c.b16 %v207, %v206
    %v223 = vpack.c.b16 %v209, %v208
    %v224 = vpack.c.b16 %v211, %v210
    %v225 = vpack.c.b16 %v213, %v212
    %v226 = vpack.c.b16 %v215, %v214
    %v227 = vpack.c.b16 %v217, %v216
    %v228 = vpack.c.b16 %v219, %v218
    %v229 = vpack.c.b16 %v221, %v220
    %238 = vmatpush.bf16.msra.mxu0 %v229
    %239 = vmatpush.bf16.msra.mxu0 %v228
    %240 = vmatpush.bf16.msra.mxu0 %v227
    %241 = vmatpush.bf16.msra.mxu0 %v226
    %242 = vmatpush.bf16.msra.mxu0 %v225
    %243 = vmatpush.bf16.msra.mxu0 %v224
    %244 = vmatpush.bf16.msra.mxu0 %v223
    %245 = vmatpush.bf16.msra.mxu0 %v222
    %246 = vmatmul.bf16.gmra.mxu0 %v169
    %v247 = vpop.f32.mrf.mxu0
    %v248 = vadd.f32 %v188, %v247
    %v249 = vpop.f32.mrf.mxu0
    %v250 = vadd.f32 %v188, %v249
    %251 = vdwg.mxu0
    %v252 = vpack.c.bf16 %v248, %v248
    %v253 = vpack.c.bf16 %v250, %v250
    %254 = vst [vmem:[%s7] sm:$0xf] %v252
    %255 = vst [vmem:[%s7 + $0x4] sm:$0xf] %v253
    // Predicated region
    $region38: #{_lambda_.1} parent=1 // pred_check
      _
    $region39: #{_lambda_.1} parent=1 // pred_check_branch
      %257 = sbr.rel (0) target = $region41
    $region40: #{_lambda_.1} parent=1 // pred_region
      _
    $region41: #{_lambda_.1} parent=1 // pred_fallthru
      _
    // Predicated region
    $region42: #{_lambda_.1} parent=1 // pred_check
      _
    $region43: #{_lambda_.1} parent=1 // pred_check_branch
      %259 = sbr.rel (0) target = $region45
    $region44: #{_lambda_.1} parent=1 // pred_region
      _
    $region45: #{_lambda_.1} parent=1 // pred_fallthru
      _
    %260 = vsyncpa [#allocation3], 1
    %261 = vsyncpa [#allocation5], 1

</llo_original>
